<compile_context>
chip_gen: v5e
topology: v5e:2x2
jax: 0.10.0
libtpu: 0.0.40
codegen_flags: <defaults>
</compile_context>

<pallas_src>
import functools

import jax
import jax.numpy as jnp
from jax.experimental import pallas as pl
from jax.experimental.pallas import tpu as pltpu


# ----------------------------- hardware-aware budgets ------------------------

def _vmem_budgets():
    """(hidden-tile byte budget, scoped VMEM limit, hard VMEM cap) per chip gen.

    v5e / v6e have 128 MiB physical VMEM -> larger budget / scoped limit;
    v7x has 64 MiB per TensorCore -> stay conservative.
    """
    mib = 1024 * 1024
    try:
        phys = pltpu.get_tpu_info().vmem_capacity_bytes
    except Exception:
        phys = 64 * mib                      # assume the smallest (v7x per-TC)
    if phys >= 100 * mib:                    # v5e / v6e
        return 40 * mib, 64 * mib, 96 * mib
    return 20 * mib, 32 * mib, 48 * mib      # v7x


_CLS_TILE_BYTES = 4 * 1024 * 1024            # per-step DMA target, CLS copy


# ----------------------------- tiling helpers -------------------------------

def _round_up(x, m):
    return ((x + m - 1) // m) * m


def _batch_tile_candidates(B):
    # Legal second-to-last sizes for the (tb, H) output block: multiples of 8
    # that divide B, plus B itself (full-dim blocks are always legal).
    cands = [t for t in range(8, B + 1, 8) if B % t == 0]
    if B not in cands:
        cands.append(B)
    return sorted(cands)


def _choose_batch_tile(B, bytes_per_row, target_bytes):
    """Largest legal batch tile within `target_bytes`, preferring to keep at
    least 2 parallel grid steps so both v7x TensorCores get work."""
    cands = _batch_tile_candidates(B)
    fit = [c for c in cands if c * bytes_per_row <= target_bytes]
    if not fit:
        return cands[0]
    par = [c for c in fit if B // c >= 2]
    return max(par) if par else max(fit)


def _choose_seq_tile(S, ts_target):
    """Sequence tile for the reduction axis.

    ts is a multiple of 128 (so the compact (tb, ts) mask block is lane-legal)
    unless a single step already covers the (8-padded) sequence.  Divisors of S
    are preferred (no padding); otherwise a lightly padded sequence length is
    returned and the wrapper zero-pads the inputs.
    """
    S8 = _round_up(S, 8)
    ts_target = max(128, (ts_target // 128) * 128)
    if ts_target >= S8:
        return S8, S8
    lo = max(128, ((ts_target // 2) // 128) * 128)
    best_t, best_pad = ts_target, _round_up(S, ts_target)
    t = ts_target
    while t >= lo:
        if S % t == 0:
            return t, S
        sp = _round_up(S, t)
        if sp < best_pad:
            best_t, best_pad = t, sp
        t -= 128
    return best_t, best_pad


# ----------------------------- kernels --------------------------------------

def _cls_copy_kernel(h_ref, o_ref):
    # h_ref is the (tb, H) slab of token 0 taken from the (B, S*H) view.
    o_ref[...] = h_ref[...]


def _cls_token0_kernel(h_ref, o_ref):
    # Fallback for lane-unaligned H: h_ref is (tb, min(S, 8), H).
    o_ref[...] = h_ref[:, 0, :]


def _masked_avg_kernel(mask_ref, den_ref, *refs, eps, scale, n_hidden, use_mxu):
    """Masked mean over the sequence axis, accumulated across S-grid steps.

      mask_ref : (tb, ts)   in the hidden dtype (compact, lane-dense)
      den_ref  : (tb, 1)    f32, precomputed mask.sum(-1)
      refs     : n_hidden x (tb, ts, H) hidden blocks, then (tb, H) output,
                 then (tb, H) f32 accumulator scratch.
    """
    h_refs = refs[:n_hidden]
    out_ref = refs[n_hidden]
    num_acc = refs[n_hidden + 1]

    s_step = pl.program_id(1)

    @pl.when(s_step == 0)
    def _init():
        num_acc[...] = jnp.zeros_like(num_acc)

    m = mask_ref[...]                        # (tb, ts)
    h = h_refs[0][...]
    for r in h_refs[1:]:
        h = h + r[...]                       # (tb, ts, H)

    if use_mxu:
        # bf16 / fp16 path: offload the masked reduction to the (otherwise
        # idle) MXU with f32 accumulation -- batched (1, ts) @ (ts, H) matvec.
        part = jnp.einsum("bqs,bsh->bqh", m[:, None, :], h,
                          preferred_element_type=jnp.float32)   # (tb, 1, H)
        num_acc[...] += part[:, 0, :]
    else:
        # f32 path: exact VPU multiply-add (matches the reference numerics).
        num_acc[...] += jnp.sum(
            h.astype(jnp.float32) * m.astype(jnp.float32)[:, :, None], axis=1)

    @pl.when(s_step == pl.num_programs(1) - 1)
    def _finalize():
        den = den_ref[...].astype(jnp.float32)          # (tb, 1)
        # Exact division; eps is added AFTER the division, as in the reference.
        pooled = (scale * num_acc[...]) / den + eps
        out_ref[...] = pooled.astype(out_ref.dtype)


# ----------------------------- pallas_call wrappers -------------------------

def _cls_pool(last_hidden):
    B, S, H = last_hidden.shape
    itemsize = jnp.dtype(last_hidden.dtype).itemsize
    _, vmem_limit, _ = _vmem_budgets()

    if H % 128 == 0:
        # Lane-aligned H: flatten to (B, S*H); the (tb, H) block at column
        # block 0 fetches ONLY the CLS token (H bytes/row instead of 8*H).
        flat = last_hidden.reshape(B, S * H)
        tb = _choose_batch_tile(B, H * itemsize, _CLS_TILE_BYTES)
        return pl.pallas_call(
            _cls_copy_kernel,
            out_shape=jax.ShapeDtypeStruct((B, H), last_hidden.dtype),
            grid=(B // tb,),
            in_specs=[pl.BlockSpec((tb, H), lambda b: (b, 0))],
            out_specs=pl.BlockSpec((tb, H), lambda b: (b, 0)),
            compiler_params=pltpu.CompilerParams(
                dimension_semantics=("parallel",),
                vmem_limit_bytes=vmem_limit),
        )(flat)

    # Fallback (H not a multiple of 128): fetch the first min(S, 8) tokens per
    # row (smallest legal sublane tile) and pick token 0.
    cls_ts = 8 if S >= 8 else S
    tb = _choose_batch_tile(B, cls_ts * H * itemsize, _CLS_TILE_BYTES)
    return pl.pallas_call(
        _cls_token0_kernel,
        out_shape=jax.ShapeDtypeStruct((B, H), last_hidden.dtype),
        grid=(B // tb,),
        in_specs=[pl.BlockSpec((tb, cls_ts, H), lambda b: (b, 0, 0))],
        out_specs=pl.BlockSpec((tb, H), lambda b: (b, 0)),
        compiler_params=pltpu.CompilerParams(
            dimension_semantics=("parallel",),
            vmem_limit_bytes=vmem_limit),
    )(last_hidden)


def _masked_avg_pool(attention_mask, hiddens, *, eps, scale, hidden_budget=None):
    n = len(hiddens)
    h0 = hiddens[0]
    B, S, H = h0.shape
    itemsize = jnp.dtype(h0.dtype).itemsize

    budget, vmem_limit, hard_cap = _vmem_budgets()
    if hidden_budget is not None:
        budget = hidden_budget

    tb_cands = _batch_tile_candidates(B)
    tb = tb_cands[0]
    per_tok = 2 * n * tb * H * itemsize          # double-buffered hidden bytes/token
    ts_target = max(8, budget // per_tok)
    S8 = _round_up(S, 8)

    if ts_target >= S8:
        # Whole sequence per step: grow the batch tile for bigger DMAs, but
        # keep >= 2 parallel batch steps when possible (v7x megacore).
        # TODO(synk): for tiny B an additional parallel H-tiling axis would be
        # needed to occupy both v7x TensorCores; not implemented here.
        ts = S_pad = S8
        tb = _choose_batch_tile(B, 2 * n * S_pad * H * itemsize, budget)
    else:
        ts, S_pad = _choose_seq_tile(S, ts_target)

    # Zero-pad an awkward sequence tail: zero mask => zero contribution, and
    # the denominator below is computed from the original mask.
    if S_pad != S:
        attention_mask_p = jnp.pad(attention_mask, ((0, 0), (0, S_pad - S)))
        hiddens = tuple(jnp.pad(h, ((0, 0), (0, S_pad - S), (0, 0)))
                        for h in hiddens)
    else:
        attention_mask_p = attention_mask

    use_mxu = itemsize < 4                       # bf16/fp16 -> MXU accumulation
    mask2 = attention_mask_p.astype(h0.dtype)    # compact (B, S_pad) layout
    den = jnp.sum(attention_mask.astype(jnp.float32), axis=-1, keepdims=True)

    kernel = functools.partial(_masked_avg_kernel, eps=eps, scale=scale,
                               n_hidden=n, use_mxu=use_mxu)
    hidden_specs = [pl.BlockSpec((tb, ts, H), lambda b, s: (b, s, 0))
                    for _ in range(n)]

    # Make sure our own tiles fit under the scoped limit (with headroom).
    need = (2 * n * tb * ts * H * itemsize       # hidden double buffers
            + 2 * tb * max(ts, 128) * itemsize   # mask double buffers
            + 2 * tb * 128 * 4                   # den (lane-padded)
            + 2 * tb * H * itemsize              # output
            + tb * H * 4)                        # f32 accumulator
    vmem_limit = max(vmem_limit, min(int(need * 1.3), hard_cap))

    return pl.pallas_call(
        kernel,
        out_shape=jax.ShapeDtypeStruct((B, H), h0.dtype),
        grid=(B // tb, S_pad // ts),
        in_specs=[pl.BlockSpec((tb, ts), lambda b, s: (b, s)),
                  pl.BlockSpec((tb, 1), lambda b, s: (b, 0))] + hidden_specs,
        out_specs=pl.BlockSpec((tb, H), lambda b, s: (b, 0)),
        scratch_shapes=[pltpu.VMEM((tb, H), jnp.float32)],
        compiler_params=pltpu.CompilerParams(
            dimension_semantics=("parallel", "arbitrary"),
            vmem_limit_bytes=vmem_limit),
    )(mask2, den, *hiddens)


def _avg_pool(attention_mask, last_hidden, eps=1e-10, hidden_budget=None):
    return _masked_avg_pool(attention_mask, (last_hidden,), eps=eps, scale=1.0,
                            hidden_budget=hidden_budget)


def _avg_two_pool(attention_mask, hidden_a, hidden_b, hidden_budget=None):
    return _masked_avg_pool(attention_mask, (hidden_a, hidden_b),
                            eps=0.0, scale=0.5, hidden_budget=hidden_budget)


# ----------------------------- module-equivalent wrapper --------------------

class Pooler:
    """JAX/Pallas equivalent of the parameter-free PyTorch Pooler."""

    VALID = ["cls", "cls_before_pooler", "avg", "avg_top2", "avg_first_last",
             "routing"]

    def __init__(self, pooler_type):
        assert pooler_type in self.VALID, \
            "unrecognized pooling type %s" % pooler_type
        self.pooler_type = pooler_type

    def __call__(self, attention_mask, outputs=None, last_hidden=None,
                 pooler_output=None, hidden_states=None, pooler_type=None):
        if outputs is not None:
            last_hidden = getattr(outputs, "last_hidden_state", last_hidden)
            pooler_output = getattr(outputs, "pooler_output", pooler_output)
            hidden_states = getattr(outputs, "hidden_states", hidden_states)
        pooler_type = self.pooler_type if pooler_type is None else pooler_type
        if pooler_type in ("cls_before_pooler", "cls"):
            return _cls_pool(last_hidden)
        elif pooler_type == "avg":
            return _avg_pool(attention_mask, last_hidden)
        elif pooler_type == "avg_first_last":
            return _avg_two_pool(attention_mask, hidden_states[0],
                                 hidden_states[-1])
        elif pooler_type == "avg_top2":
            return _avg_two_pool(attention_mask, hidden_states[-1],
                                 hidden_states[-2])
        else:
            # TODO(synk): 'routing' is accepted by __init__ but has no forward
            # implementation in the reference module either.
            raise NotImplementedError


# ----------------------------- reference (pure JAX, f32) ---------------------

def _ref(pooler_type, attention_mask, last_hidden, hidden_states):
    m = attention_mask.astype(jnp.float32)
    lh = last_hidden.astype(jnp.float32)
    if pooler_type in ("cls", "cls_before_pooler"):
        return lh[:, 0]
    if pooler_type == "avg":
        return (lh * m[:, :, None]).sum(1) / m.sum(-1)[:, None] + 1e-10
    hs = [h.astype(jnp.float32) for h in hidden_states]
    if pooler_type == "avg_first_last":
        h = (hs[0] + hs[-1]) / 2.0
    elif pooler_type == "avg_top2":
        h = (hs[-1] + hs[-2]) / 2.0
    else:
        raise NotImplementedError
    return (h * m[:, :, None]).sum(1) / m.sum(-1)[:, None]


# ----------------------------- main ------------------------------------------

if __name__ == "__main__":
    key = jax.random.PRNGKey(0)
    failures = []

    def make_inputs(tag, B, S, H, L, dtype):
        k = jax.random.fold_in(key, tag)
        hs = tuple(
            jax.random.normal(jax.random.fold_in(k, i), (B, S, H),
                              jnp.float32).astype(dtype)
            for i in range(L))
        mask = jnp.ones((B, S), jnp.float32)
        mask = mask.at[1, S - 2:].set(0.0)   # pad out last 2 tokens of row 1
        return hs, mask

    def check(name, out, ref, atol, rtol):
        out = jax.block_until_ready(out)
        o = jnp.asarray(out, jnp.float32)
        r = jnp.asarray(ref, jnp.float32)
        good = (out.shape == ref.shape) and bool(
            jnp.allclose(o, r, atol=atol, rtol=rtol))
        if not good:
            err = float(jnp.max(jnp.abs(o - r))) if out.shape == ref.shape \
                else float("nan")
            failures.append(name)
            print(f"MISMATCH: {name} (max abs err {err:.3e})")

    # 1) f32, lane-aligned H: every pooler type through the public API.
    hs, mask = make_inputs(1, 2, 8, 128, 3, jnp.float32)
    for ptype in ["cls", "cls_before_pooler", "avg", "avg_first_last",
                  "avg_top2"]:
        out = Pooler(ptype)(mask, last_hidden=hs[-1], hidden_states=hs)
        check(f"f32/H128/{ptype}", out, _ref(ptype, mask, hs[-1], hs),
              1e-5, 1e-5)

    # 2) f32, H not a multiple of 128 (CLS token-0 fallback, narrow-lane avg).
    hs, mask = make_inputs(2, 2, 8, 96, 2, jnp.float32)
    for ptype in ["cls", "avg"]:
        out = Pooler(ptype)(mask, last_hidden=hs[-1], hidden_states=hs)
        check(f"f32/H96/{ptype}", out, _ref(ptype, mask, hs[-1], hs),
              1e-5, 1e-5)

    # 3) f32, ragged sequence length (zero-padding path).
    hs, mask = make_inputs(3, 2, 12, 128, 2, jnp.float32)
    out = Pooler("avg_first_last")(mask, last_hidden=hs[-1], hidden_states=hs)
    check("f32/S12/avg_first_last", out,
          _ref("avg_first_last", mask, hs[-1], hs), 1e-5, 1e-5)

    # 4) bf16: MXU-accumulation path (f32 accumulate on the MXU).
    hs, mask = make_inputs(4, 2, 128, 128, 3, jnp.bfloat16)
    hs32 = tuple(h.astype(jnp.float32) for h in hs)
    for ptype in ["avg", "avg_top2"]:
        out = Pooler(ptype)(mask, last_hidden=hs[-1], hidden_states=hs)
        check(f"bf16/{ptype}", out, _ref(ptype, mask, hs32[-1], hs32),
              2e-2, 2e-2)

    # 5)/6) Tiny VMEM budget to force a multi-step sequence reduction.
    for tag, dtype, bgt, tol in ((5, jnp.float32, 300 * 1024, 1e-5),
                                 (6, jnp.bfloat16, 150 * 1024, 2e-2)):
        hs, mask = make_inputs(tag, 2, 256, 128, 1, dtype)
        out = _avg_pool(mask, hs[-1], hidden_budget=bgt)
        ref = _ref("avg", mask, hs[-1].astype(jnp.float32), None)
        check(f"{jnp.dtype(dtype).name}/multistep/avg", out, ref, tol, tol)

    if not failures:
        print("KERNEL_OK")
</pallas_src>

<mosaic_0001>
module attributes {stable_mosaic.version = 11 : i64} {
  func.func @_cls_copy_kernel(%arg0: i32, %arg1: memref<2x128xf32, #tpu.memory_space<vmem>>, %arg2: memref<2x128xf32, #tpu.memory_space<vmem>>) attributes {dimension_semantics = [#tpu.dimension_semantics<parallel>], iteration_bounds = array<i64: 1>, scalar_prefetch = 0 : i64, scratch_operands = 0 : i64, tpu.core_type = #tpu.core_type<tc>, window_params = [{transform_indices = @transform_0, window_bounds = array<i64: 2, 128>}, {transform_indices = @transform_1, window_bounds = array<i64: 2, 128>}]} {
    %c0 = arith.constant 0 : index
    %c0_0 = arith.constant 0 : index
    %0 = vector.load %arg1[%c0, %c0_0] : memref<2x128xf32, #tpu.memory_space<vmem>>, vector<2x128xf32>
    %c0_1 = arith.constant 0 : index
    %c0_2 = arith.constant 0 : index
    %1 = vector.load %arg2[%c0_1, %c0_2] : memref<2x128xf32, #tpu.memory_space<vmem>>, vector<2x128xf32>
    tpu.vector_store %arg2[%c0_1, %c0_2], %0 {strides = array<i32>} : memref<2x128xf32, #tpu.memory_space<vmem>>, vector<2x128xf32>,
    return
  }
  func.func @transform_0(%arg0: i32) -> (i32, i32) {
    %c0_i32 = arith.constant 0 : i32
    %c0_i32_0 = arith.constant 0 : i32
    return %arg0, %c0_i32 : i32, i32
  }
  func.func @transform_1(%arg0: i32) -> (i32, i32) {
    %c0_i32 = arith.constant 0 : i32
    %c0_i32_0 = arith.constant 0 : i32
    return %arg0, %c0_i32 : i32, i32
  }
}

</mosaic_0001>

<llo_original>
// kernel: tpu_custom_call.1
$region0: #{tpu_custom_call.1}
  #allocation0 [shape = 'u32[]', space=smem, size = 0x4, offset = 0x4, fixed_abs, tag = 'smem constant byte address 0x4 - core index']
  #allocation1 [shape = 'u32[72,128]{1,0:T(1,128)}', space=vmem, size = 0x9000, scoped, tag = 'internal scratch']
  %s0 = inlined_call_operand.hbm [shape: f32[2,1024], index: 0, kind: input, shape index: {}]
  %s1 = inlined_call_operand.hbm [shape: f32[2,128], index: 1, kind: output, shape index: {}]
  %s2 = sld [smem:[#allocation0]]
  $region18: #{tpu_custom_call.1} parent=0
    _
  %s4 = ssub.s32 1, %s2
  %s5 = scalar_select 0, %s4, %s2
  $region1: #{tpu_custom_call.1} parent=0
    #allocation2 [shape = 'u8[1024]{0}', space=vmem, size = 0x400, scoped, tag = 'input window, operand 0, single buffered']
    #allocation3 [shape = 's32[1]{0}', space=sflag, size = 0x4, scoped, tag = 'scoped memory for tpu_custom_call.1']
    #allocation4 [shape = 's32[1]{0}', space=sflag, size = 0x4, scoped, tag = 'scoped memory for tpu_custom_call.1']
    #allocation5 [shape = 'u8[1024]{0}', space=vmem, size = 0x400, scoped, tag = 'output window, operand 0, single buffered']
    %6 = vsyncpa [#allocation3], 0
    %7 = vsyncpa [#allocation4], 0
    // Predicated region
    $region2: #{tpu_custom_call.1} parent=1 // pred_check
      _
    $region3: #{tpu_custom_call.1} parent=1 // pred_check_branch
      %9 = sbr.rel (0) target = $region5
    $region4: #{tpu_custom_call.1} parent=1 // pred_region
      %11 = vsyncadd [#allocation3], 0
      %s13 = sshll.u32 %s0, 4
      %s14 = int_to_ptr.hbm [resolvable:$true] %s13
      %s15 = sshll.u32 [#allocation2], 4
      %s16 = int_to_ptr.vmem [resolvable:$true] %s15
      %18 = dma.hbm_to_vmem [thread:$0]  %s14, 32, %s16, [#allocation3]
    $region5: #{tpu_custom_call.1} parent=1 // pred_fallthru
      _
    // Predicated region
    $region6: #{tpu_custom_call.1} parent=1 // pred_check
      _
    $region7: #{tpu_custom_call.1} parent=1 // pred_check_branch
      %20 = sbr.rel (0) target = $region9
    $region8: #{tpu_custom_call.1} parent=1 // pred_region
      %22 = dma.done [#allocation3], 32
    $region9: #{tpu_custom_call.1} parent=1 // pred_fallthru
      _
    %v23 = vld [vmem:[#allocation2] sm:$0x3]
    %24 = vst [vmem:[#allocation5] sm:$0x3] %v23
    // Predicated region
    $region10: #{tpu_custom_call.1} parent=1 // pred_check
      _
    $region11: #{tpu_custom_call.1} parent=1 // pred_check_branch
      %26 = sbr.rel (0) target = $region13
    $region12: #{tpu_custom_call.1} parent=1 // pred_region
      %28 = vsyncadd [#allocation4], 0
      %s30 = sshll.u32 [#allocation5], 4
      %s31 = int_to_ptr.vmem [resolvable:$true] %s30
      %s32 = sshll.u32 %s1, 4
      %s33 = int_to_ptr.hbm [resolvable:$true] %s32
      %35 = dma.vmem_to_hbm [thread:$0]  %s31, 32, %s33, [#allocation4]
    $region13: #{tpu_custom_call.1} parent=1 // pred_fallthru
      _
    // Predicated region
    $region14: #{tpu_custom_call.1} parent=1 // pred_check
      _
    $region15: #{tpu_custom_call.1} parent=1 // pred_check_branch
      %37 = sbr.rel (0) target = $region17
    $region16: #{tpu_custom_call.1} parent=1 // pred_region
      %39 = dma.done [#allocation4], 32
    $region17: #{tpu_custom_call.1} parent=1 // pred_fallthru
      _
    %40 = vsyncpa [#allocation3], 1
    %41 = vsyncpa [#allocation4], 1

</llo_original>
